<compile_context>
chip_gen: v6e
topology: v6e:2x2x1
jax: 0.10.0
libtpu: 0.0.40
codegen_flags: <defaults>
</compile_context>

<pallas_src>
import functools

import jax
import jax.numpy as jnp
from jax.experimental import pallas as pl
from jax.experimental.pallas import tpu as pltpu


def _round_up(x, m):
    return ((x + m - 1) // m) * m


def _vmem_budget_bytes():
    # Generation-aware scoped-VMEM budget:
    #   v5e/v6e: 128 MiB physical -> ~96 MiB scoped
    #   v7x    :  64 MiB per TC   -> ~48 MiB scoped
    try:
        cap = int(pltpu.get_tpu_info().vmem_capacity_bytes)
    except Exception:  # conservative fallback if the query is unavailable
        cap = 64 * 1024 * 1024
    return min((cap * 3) // 4, 100 * 1024 * 1024)


# ----------------------------------------------------------------------------
# Pallas kernel: fused (W @ patches) + bias + leaky_relu(0.2), NCL-native
# ----------------------------------------------------------------------------
def _bottleneck_kernel(p_ref, w_ref, b_ref, o_ref):
    # p_ref : (1, CK, t_l)        bf16 im2col tile (lanes = L_out positions)
    # w_ref : (C_out_pad, CK)     bf16, resident across the grid
    # b_ref : (C_out_pad, 1)      f32,  resident across the grid
    # o_ref : (1, C_out_pad, t_l) f32
    acc = jnp.dot(w_ref[...], p_ref[0], preferred_element_type=jnp.float32)
    acc = acc + b_ref[...]                      # broadcast bias over L_out lanes
    # TODO(synk): Dropout(p=0.5) is identity in eval mode; training-mode RNG
    #             masking/scaling is intentionally not reproduced here.
    # leaky_relu(0.2) as mul+max (cheaper than compare+select on the VALU).
    o_ref[0] = jnp.maximum(acc, 0.2 * acc).astype(o_ref.dtype)


def _fused_conv(patches, w_mat, b_col, *, t_l, vmem_limit):
    # patches : (N, CK, L_out_pad)     bf16
    # w_mat   : (C_out_pad, CK)        bf16
    # b_col   : (C_out_pad, 1)         f32
    N, CK, L_out_pad = patches.shape
    C_out_pad = w_mat.shape[0]
    grid = (N, L_out_pad // t_l)
    return pl.pallas_call(
        _bottleneck_kernel,
        out_shape=jax.ShapeDtypeStruct((N, C_out_pad, L_out_pad), jnp.float32),
        grid_spec=pltpu.PrefetchScalarGridSpec(
            num_scalar_prefetch=0,
            grid=grid,
            in_specs=[
                # L-tiled patches: pipelined / double-buffered by BlockSpec.
                pl.BlockSpec((1, CK, t_l), lambda n, j: (n, 0, j)),
                # weight + bias: constant block index -> resident in VMEM
                # (tiny at these sizes; see TODO about pl.Buffered(1) for
                #  large CK*C_out, where halving the resident footprint matters).
                pl.BlockSpec((C_out_pad, CK), lambda n, j: (0, 0)),
                pl.BlockSpec((C_out_pad, 1), lambda n, j: (0, 0)),
            ],
            out_specs=pl.BlockSpec((1, C_out_pad, t_l), lambda n, j: (n, 0, j)),
        ),
        compiler_params=pltpu.CompilerParams(
            # Independent (batch, L-tile) work -> shard across TensorCores.
            dimension_semantics=("parallel", "parallel"),
            vmem_limit_bytes=vmem_limit,
        ),
    )(patches, w_mat, b_col)


# ----------------------------------------------------------------------------
# Module-equivalent wrapper (NCL in, NCL out — no transposes anywhere)
# ----------------------------------------------------------------------------
@functools.partial(jax.jit, static_argnames=("stride",))
def bottleneck_forward(x, weight, bias, *, stride=2):
    """x: (N, C_in, L) f32 -> (N, C_out, L_out) f32."""
    N, C_in, L = x.shape
    C_out, C_in_w, K = weight.shape
    assert C_in == C_in_w
    pad = K // 2                                   # PyTorch: padding = kernel // 2
    L_out = (L + 2 * pad - K) // stride + 1
    CK = C_in * K

    # --- glue: bf16 cast + zero-pad + NCL-native im2col ----------------------
    x_pad = jnp.pad(x.astype(jnp.bfloat16), ((0, 0), (0, 0), (pad, pad)))
    stop = (L_out - 1) * stride + 1
    cols = [x_pad[:, :, k:k + stop:stride] for k in range(K)]   # K x (N,C_in,L_out)
    # (N, C_in, K, L_out) -> (N, C_in*K, L_out): contiguous merge, no transpose;
    # ordering is C_in-major / K-minor, matching weight.reshape(C_out, C_in*K).
    patches = jnp.stack(cols, axis=2).reshape(N, CK, L_out)

    # --- tiling / padding for TPU layout -------------------------------------
    C_out_pad = _round_up(C_out, 8)        # sublane granule only (no 128x blowup)
    vmem_limit = _vmem_budget_bytes()
    # Double-buffered pipeline bytes per output lane (patches bf16 + out f32),
    # plus the resident weight/bias buffers.
    bytes_per_lane = 2 * (CK * 2) + 2 * (C_out_pad * 4)
    resident = 2 * (C_out_pad * CK * 2 + C_out_pad * 4)
    avail = max(0, vmem_limit // 2 - resident)
    t_l = max(128, (min(avail // bytes_per_lane, 4096) // 128) * 128)
    t_l = min(t_l, _round_up(L_out, 128))  # lane-dense tiles, grid divides evenly
    L_out_pad = _round_up(L_out, t_l)

    patches = jnp.pad(patches, ((0, 0), (0, 0), (0, L_out_pad - L_out)))
    w_mat = jnp.pad(weight.reshape(C_out, CK),
                    ((0, C_out_pad - C_out), (0, 0))).astype(jnp.bfloat16)
    b_col = jnp.pad(bias.astype(jnp.float32),
                    (0, C_out_pad - C_out)).reshape(C_out_pad, 1)

    # --- hot path in Pallas ---------------------------------------------------
    out = _fused_conv(patches, w_mat, b_col, t_l=t_l, vmem_limit=vmem_limit)

    # strip padding; result is already (N, C_out, L_out) in NCL order.
    # (Output kept f32 to match PyTorch Conv1d numerics; switch the out_shape
    #  dtype + final astype to bf16 if downstream tolerates it.)
    return out[:, :C_out, :L_out]


# ----------------------------------------------------------------------------
# Deterministic parameter init (mirrors nn.Conv1d + nn.init.orthogonal_)
# ----------------------------------------------------------------------------
def init_params(key, in_channel, out_channel, kernel):
    k_w, k_b = jax.random.split(key)
    rows, cols = out_channel, in_channel * kernel
    big, small = max(rows, cols), min(rows, cols)
    a = jax.random.normal(k_w, (big, small), dtype=jnp.float32)
    q, r = jnp.linalg.qr(a)                       # orthonormal columns
    q = q * jnp.sign(jnp.diagonal(r))[None, :]    # sign fix (like torch orthogonal_)
    flat = q.T if rows < cols else q              # (rows, cols)
    weight = flat.reshape(out_channel, in_channel, kernel)
    fan_in = in_channel * kernel                  # default Conv1d bias init
    bound = 1.0 / jnp.sqrt(jnp.float32(fan_in))
    bias = jax.random.uniform(k_b, (out_channel,), jnp.float32, -bound, bound)
    return weight, bias


if __name__ == "__main__":
    key = jax.random.PRNGKey(0)
    k_x, k_p = jax.random.split(key)

    N, C_in, L = 2, 4, 16
    C_out, K, stride = 8, 5, 2

    x = jax.random.normal(k_x, (N, C_in, L), dtype=jnp.float32)
    weight, bias = init_params(k_p, C_in, C_out, K)

    out = bottleneck_forward(x, weight, bias, stride=stride)
    jax.block_until_ready(out)

    # shape / sanity checks against the PyTorch conv1d formula
    pad = K // 2
    L_out = (L + 2 * pad - K) // stride + 1
    assert out.shape == (N, C_out, L_out), out.shape
    assert bool(jnp.all(jnp.isfinite(out)))

    # reference with the same bf16 operand cast + f32 accumulation as the kernel
    ref = jax.lax.conv_general_dilated(
        x.astype(jnp.bfloat16), weight.astype(jnp.bfloat16),
        window_strides=(stride,), padding=[(pad, pad)],
        dimension_numbers=("NCH", "OIH", "NCH"),
        preferred_element_type=jnp.float32,
    ) + bias[None, :, None]
    ref = jnp.maximum(ref, 0.2 * ref)
    err = float(jnp.max(jnp.abs(out - jnp.asarray(ref))))
    assert err < 0.1, f"max abs error {err}"

    print("KERNEL_OK")
</pallas_src>

<mosaic_0001>
module attributes {stable_mosaic.version = 11 : i64} {
  func.func @_bottleneck_kernel(%arg0: i32, %arg1: i32, %arg2: memref<1x20x128xbf16, #tpu.memory_space<vmem>>, %arg3: memref<8x20xbf16, #tpu.memory_space<vmem>>, %arg4: memref<8x1xf32, #tpu.memory_space<vmem>>, %arg5: memref<1x8x128xf32, #tpu.memory_space<vmem>>) attributes {dimension_semantics = [#tpu.dimension_semantics<parallel>, #tpu.dimension_semantics<parallel>], iteration_bounds = array<i64: 2, 1>, scalar_prefetch = 0 : i64, scratch_operands = 0 : i64, tpu.core_type = #tpu.core_type<tc>, window_params = [{transform_indices = @transform_0, window_bounds = array<i64: 1, 20, 128>}, {pipeline_mode = #tpu.pipeline_mode<synchronous>, transform_indices = @transform_1, window_bounds = array<i64: 8, 20>}, {pipeline_mode = #tpu.pipeline_mode<synchronous>, transform_indices = @transform_2, window_bounds = array<i64: 8, 1>}, {transform_indices = @transform_3, window_bounds = array<i64: 1, 8, 128>}]} {
    %c0 = arith.constant 0 : index
    %c0_0 = arith.constant 0 : index
    %0 = vector.load %arg3[%c0, %c0_0] : memref<8x20xbf16, #tpu.memory_space<vmem>>, vector<8x20xbf16>
    %c0_1 = arith.constant 0 : index
    %c0_2 = arith.constant 0 : index
    %c0_3 = arith.constant 0 : index
    %1 = vector.load %arg2[%c0_1, %c0_2, %c0_3] : memref<1x20x128xbf16, #tpu.memory_space<vmem>>, vector<1x20x128xbf16>
    %2 = vector.shape_cast %1 : vector<1x20x128xbf16> to vector<20x128xbf16>
    %cst = arith.constant dense<0.000000e+00> : vector<8x128xf32>
    %3 = tpu.matmul %0, %2, %cst {dimension_numbers = #tpu.dot_dimension_numbers<[1], [0], [0], [1], [0, 0, 1, 1], [], []>} : vector<8x20xbf16>, vector<20x128xbf16>, vector<8x128xf32> -> vector<8x128xf32>
    %c0_4 = arith.constant 0 : index
    %c0_5 = arith.constant 0 : index
    %4 = vector.load %arg4[%c0_4, %c0_5] : memref<8x1xf32, #tpu.memory_space<vmem>>, vector<8x1xf32>
    %5 = vector.broadcast %4 : vector<8x1xf32> to vector<8x128xf32>
    %6 = arith.addf %3, %5 : vector<8x128xf32>
    %cst_6 = arith.constant 2.000000e-01 : f32
    %7 = vector.broadcast %cst_6 : f32 to vector<8x128xf32>
    %8 = arith.mulf %7, %6 : vector<8x128xf32>
    %9 = arith.maximumf %6, %8 : vector<8x128xf32>
    %c0_7 = arith.constant 0 : index
    %c0_8 = arith.constant 0 : index
    %c0_9 = arith.constant 0 : index
    %10 = vector.load %arg5[%c0_7, %c0_8, %c0_9] : memref<1x8x128xf32, #tpu.memory_space<vmem>>, vector<1x8x128xf32>
    %11 = vector.shape_cast %10 : vector<1x8x128xf32> to vector<8x128xf32>
    %12 = vector.shape_cast %9 : vector<8x128xf32> to vector<1x8x128xf32>
    tpu.vector_store %arg5[%c0_7, %c0_8, %c0_9], %12 {strides = array<i32>} : memref<1x8x128xf32, #tpu.memory_space<vmem>>, vector<1x8x128xf32>,
    return
  }
  func.func @transform_0(%arg0: i32, %arg1: i32) -> (i32, i32, i32) {
    %c0_i32 = arith.constant 0 : i32
    %c0_i32_0 = arith.constant 0 : i32
    return %arg0, %c0_i32, %arg1 : i32, i32, i32
  }
  func.func @transform_1(%arg0: i32, %arg1: i32) -> (i32, i32) {
    %c0_i32 = arith.constant 0 : i32
    %c0_i32_0 = arith.constant 0 : i32
    %c0_i32_1 = arith.constant 0 : i32
    return %c0_i32, %c0_i32_0 : i32, i32
  }
  func.func @transform_2(%arg0: i32, %arg1: i32) -> (i32, i32) {
    %c0_i32 = arith.constant 0 : i32
    %c0_i32_0 = arith.constant 0 : i32
    %c0_i32_1 = arith.constant 0 : i32
    return %c0_i32, %c0_i32_0 : i32, i32
  }
  func.func @transform_3(%arg0: i32, %arg1: i32) -> (i32, i32, i32) {
    %c0_i32 = arith.constant 0 : i32
    %c0_i32_0 = arith.constant 0 : i32
    return %arg0, %c0_i32, %arg1 : i32, i32, i32
  }
}

</mosaic_0001>

<llo_original>
// kernel: bottleneck_forward.1
$region0: #{bottleneck_forward.1}
  #allocation0 [shape = 'u32[]', space=smem, size = 0x4, offset = 0x4, fixed_abs, tag = 'smem constant byte address 0x4 - core index']
  #allocation1 [shape = 'u32[144,128]{1,0:T(1,128)}', space=vmem, size = 0x12000, scoped, tag = 'internal scratch']
  %s0 = inlined_call_operand.vmem [shape: bf16[2,20,128], index: 0, kind: input, shape index: {}]
  %s1 = inlined_call_operand.vmem [shape: bf16[8,20], index: 1, kind: input, shape index: {}]
  %s2 = inlined_call_operand.vmem [shape: f32[8,1], index: 2, kind: input, shape index: {}]
  %s3 = inlined_call_operand.hbm [shape: f32[2,8,128], index: 3, kind: output, shape index: {}]
  %s4 = sld [smem:[#allocation0]]
  $region45: #{bottleneck_forward.1} parent=0
    _
  %s6 = ssub.s32 1, %s4
  %s7 = scalar_select 0, %s6, %s4
  $region1: #{bottleneck_forward.1} parent=0
    #allocation2 [shape = 'u8[8192]{0}', space=vmem, size = 0x2000, scoped, tag = 'output window, operand 0']
    #allocation3 [shape = 's32[2]{0}', space=sflag, size = 0x8, scoped, tag = 'scoped memory for bottleneck_forward.1']
    %8 = vsyncpa [#allocation3], 0
    %s9 = scalar_lea.sflag [#allocation3], 1
    %10 = vsyncpa %s9, 0
    loop: start=0, step=1, limit=4
    $region2: #{bottleneck_forward.1} parent=1 // loop_pre_header
      _
    $region3: #{bottleneck_forward.1} parent=1 // loop_header
      %s12 = sphi 0, %s16
      %p13 = scmp.ge.s32.totalorder %s12, 4
      %s19 = sphi 0, %s31
      %s20 = sphi 0, %s27
      %s21 = sphi 0, %s19
      %s22 = sphi 0, %s20
      %s23 = sphi 0, %s21
      %s24 = sphi 0, %s22
      %s36 = sphi 0, %s38
      %s39 = sphi 0, %s36
      %s40 = sphi 0, %s39
      %s56 = sphi 0, %s40
      %s60 = sphi 0, %s60
      %s62 = sphi 0, %s60
      %s63 = sphi 0, %s62
      %s77 = sphi 0, %s63
      %s81 = sphi 0, %s81
      %s83 = sphi 0, %s81
      %s84 = sphi 0, %s83
      %s98 = sphi 0, %s84
      %s106 = sphi 0, %s108
      %s109 = sphi 0, %s106
      %s110 = sphi 0, %s109
      %s126 = sphi 0, %s110
    $region4: #{bottleneck_forward.1} parent=1 // loop_header_branch
      %15 = sbr.rel (%p13) target = $region8
    $region5: #{bottleneck_forward.1} parent=1 // loop_body
      %s17 = ssub.s32 %s12, 1
      %s18 = ssub.s32 %s12, 2
      %s25 = sadd.s32 1, %s20
      %p26 = scmp.ge.s32.totalorder %s25, 1
      %s27 = scalar_select %p26, 0, %s25
      %s28 = sadd.s32 1, %s19
      %s29 = scalar_select %p26, %s28, %s19
      %p30 = scmp.ge.s32.totalorder %s29, 2
      %s31 = scalar_select %p30, 0, %s29
      %s32 = ssub.s32 %s19, %s31
      %s33 = ssub.s32 %s20, %s27
      %s34 = sor.u32 %s32, %s33
      %p35 = scmp.eq.s32.totalorder %s34, 0
      %s37 = sadd.s32 %s36, 1
      %s38 = scalar_select %p35, %s36, %s37
      %p41 = pneg %p35
      %p42 = scmp.eq.s32.totalorder %s12, 1
      %p43 = por %p41, %p42
      %p44 = scmp.ne.s32.totalorder %s36, %s39
      %p45 = scmp.eq.s32.totalorder %s12, 0
      %p46 = por %p44, %p45
      %p47 = scmp.ne.s32.totalorder %s36, %s39
      %p48 = scmp.eq.s32.totalorder %s17, 1
      %p49 = por %p47, %p48
      %p50 = scmp.ne.s32.totalorder %s39, %s40
      %p51 = scmp.eq.s32.totalorder %s17, 0
      %p52 = por %p50, %p51
      %p53 = scmp.ne.s32.totalorder %s39, %s40
      %p54 = scmp.eq.s32.totalorder %s18, 1
      %p55 = por %p53, %p54
      %p57 = scmp.ne.s32.totalorder %s40, %s56
      %p58 = scmp.eq.s32.totalorder %s18, 0
      %p59 = por %p57, %p58
      %s61 = sadd.s32 %s60, 1
      %p64 = scmp.eq.s32.totalorder %s12, 1
      %p65 = scmp.ne.s32.totalorder %s60, %s62
      %p66 = scmp.eq.s32.totalorder %s12, 0
      %p67 = por %p65, %p66
      %p68 = scmp.ne.s32.totalorder %s60, %s62
      %p69 = scmp.eq.s32.totalorder %s17, 1
      %p70 = por %p68, %p69
      %p71 = scmp.ne.s32.totalorder %s62, %s63
      %p72 = scmp.eq.s32.totalorder %s17, 0
      %p73 = por %p71, %p72
      %p74 = scmp.ne.s32.totalorder %s62, %s63
      %p75 = scmp.eq.s32.totalorder %s18, 1
      %p76 = por %p74, %p75
      %p78 = scmp.ne.s32.totalorder %s63, %s77
      %p79 = scmp.eq.s32.totalorder %s18, 0
      %p80 = por %p78, %p79
      %s82 = sadd.s32 %s81, 1
      %p85 = scmp.eq.s32.totalorder %s12, 1
      %p86 = scmp.ne.s32.totalorder %s81, %s83
      %p87 = scmp.eq.s32.totalorder %s12, 0
      %p88 = por %p86, %p87
      %p89 = scmp.ne.s32.totalorder %s81, %s83
      %p90 = scmp.eq.s32.totalorder %s17, 1
      %p91 = por %p89, %p90
      %p92 = scmp.ne.s32.totalorder %s83, %s84
      %p93 = scmp.eq.s32.totalorder %s17, 0
      %p94 = por %p92, %p93
      %p95 = scmp.ne.s32.totalorder %s83, %s84
      %p96 = scmp.eq.s32.totalorder %s18, 1
      %p97 = por %p95, %p96
      %p99 = scmp.ne.s32.totalorder %s84, %s98
      %p100 = scmp.eq.s32.totalorder %s18, 0
      %p101 = por %p99, %p100
      %s102 = ssub.s32 %s19, %s31
      %s103 = ssub.s32 %s20, %s27
      %s104 = sor.u32 %s102, %s103
      %p105 = scmp.eq.s32.totalorder %s104, 0
      %s107 = sadd.s32 %s106, 1
      %s108 = scalar_select %p105, %s106, %s107
      %p111 = pneg %p105
      %p112 = scmp.eq.s32.totalorder %s12, 1
      %p113 = por %p111, %p112
      %p114 = scmp.ne.s32.totalorder %s106, %s109
      %p115 = scmp.eq.s32.totalorder %s12, 0
      %p116 = por %p114, %p115
      %p117 = scmp.ne.s32.totalorder %s106, %s109
      %p118 = scmp.eq.s32.totalorder %s17, 1
      %p119 = por %p117, %p118
      %p120 = scmp.ne.s32.totalorder %s109, %s110
      %p121 = scmp.eq.s32.totalorder %s17, 0
      %p122 = por %p120, %p121
      %p123 = scmp.ne.s32.totalorder %s109, %s110
      %p124 = scmp.eq.s32.totalorder %s18, 1
      %p125 = por %p123, %p124
      %p127 = scmp.ne.s32.totalorder %s110, %s126
      %p128 = scmp.eq.s32.totalorder %s18, 0
      %p129 = por %p127, %p128
      %p130 = scmp.le.s32.totalorder 1, %s12
      %p131 = scmp.lt.s32.totalorder %s12, 3
      %p132 = pnand %p130, %p131
      %p133 = pneg %p132
      // Predicated region
      $region9: #{bottleneck_forward.1} parent=5 // pred_check
        _
      $region10: #{bottleneck_forward.1} parent=5 // pred_check_branch
        %135 = sbr.rel (%p132) target = $region12
      $region11: #{bottleneck_forward.1} parent=5 // pred_region
        %s136 = ssub.s32 %s12, 1
        // Predicated region
        $region13: #{bottleneck_forward.1} parent=11 // pred_check
          %p137 = pneg %p73
        $region14: #{bottleneck_forward.1} parent=11 // pred_check_branch
          %139 = sbr.rel (%p137) target = $region16
        $region15: #{bottleneck_forward.1} parent=11 // pred_region
          _
        $region16: #{bottleneck_forward.1} parent=11 // pred_fallthru
          _
        // Predicated region
        $region17: #{bottleneck_forward.1} parent=11 // pred_check
          %p140 = pneg %p94
        $region18: #{bottleneck_forward.1} parent=11 // pred_check_branch
          %142 = sbr.rel (%p140) target = $region20
        $region19: #{bottleneck_forward.1} parent=11 // pred_region
          _
        $region20: #{bottleneck_forward.1} parent=11 // pred_fallthru
          _
      $region12: #{bottleneck_forward.1} parent=5 // pred_fallthru
        _
      %p143 = scmp.lt.s32.totalorder %s12, 2
      // Predicated region
      $region21: #{bottleneck_forward.1} parent=5 // pred_check
        %p144 = pneg %p143
      $region22: #{bottleneck_forward.1} parent=5 // pred_check_branch
        %146 = sbr.rel (%p144) target = $region24
      $region23: #{bottleneck_forward.1} parent=5 // pred_region
        // Predicated region
        $region25: #{bottleneck_forward.1} parent=23 // pred_check
          %p147 = pneg %p46
        $region26: #{bottleneck_forward.1} parent=23 // pred_check_branch
          %149 = sbr.rel (%p147) target = $region28
        $region27: #{bottleneck_forward.1} parent=23 // pred_region
          %p150 = scmp.lt.s32.totalorder %s19, 1
          %s151 = scalar_select %p150, %s19, 1
          %p152 = scmp.lt.s32.totalorder %s20, 0
          %s153 = scalar_select %p152, %s20, 0
          %s154 = smul.addr %s151, 3
          %s155 = sadd.s32 %s153, %s154
          %s156 = smul.addr %s155, 4
          %s157 = scalar_lea.vmem %s0, %s156
        $region28: #{bottleneck_forward.1} parent=23 // pred_fallthru
          _
      $region24: #{bottleneck_forward.1} parent=5 // pred_fallthru
        _
      %p158 = scmp.le.s32.totalorder 1, %s12
      %p159 = scmp.lt.s32.totalorder %s12, 3
      %p160 = pnand %p158, %p159
      %p161 = pneg %p160
      // Predicated region
      $region29: #{bottleneck_forward.1} parent=5 // pred_check
        _
      $region30: #{bottleneck_forward.1} parent=5 // pred_check_branch
        %163 = sbr.rel (%p160) target = $region32
      $region31: #{bottleneck_forward.1} parent=5 // pred_region
        %s164 = ssub.s32 %s12, 1
        %p165 = scmp.lt.s32.totalorder %s21, 1
        %s166 = scalar_select %p165, %s21, 1
        %p167 = scmp.lt.s32.totalorder %s22, 0
        %s168 = scalar_select %p167, %s22, 0
        %s169 = smul.addr %s166, 3
        %s170 = sadd.s32 %s168, %s169
        %s171 = smul.addr %s170, 4
        %s172 = scalar_lea.vmem %s0, %s171
        %p173 = pneg %p52
        %p174 = pneg %p49
        %p175 = pneg %p73
        %p176 = pneg %p70
        %p177 = pneg %p94
        %p178 = pneg %p91
        %p179 = pneg %p122
        %p180 = pneg %p119
        %s181 = sand.u32 %s109, 1
        %s182 = scalar_lea.sflag [#allocation3], %s181
        %s183 = sand.u32 %s109, 1
        %s184 = smul.addr %s183, 8
        %s185 = scalar_lea.vmem [#allocation2], %s184
        %p186 = scmp.lt.s32.totalorder %s21, 1
        %s187 = scalar_select %p186, %s21, 1
        %p188 = scmp.lt.s32.totalorder %s22, 0
        %s189 = scalar_select %p188, %s22, 0
        %s190 = smul.addr %s187, 3
        %s191 = sadd.s32 %s189, %s190
        %s192 = smul.addr %s191, 4
        %s193 = scalar_lea.vmem %s0, %s192
        %v195 = vld [vmem:[%s1] sm:$0xf]
        %v196 = vld [vmem:[%s193] sm:$0xf]
        %v197 = vld [vmem:[%s193 + $0x4] sm:$0xf]
        %v198 = vld [vmem:[%s193 + $0x8] sm:$0x3]
        %v199 = vld [vmem:[%s2] sm:$0xff]
        %201 = vset.pattern.permute.xlu0 0
        %202 = vperm.xlu0 %201, %v199
        %v203 = vpop.permute.xlu0 %202
        %v208 = vunpack.c.l.b16 %v196
        %v209 = vunpack.c.l.b16 %v197
        %v210 = vunpack.c.l.b16 %v198
        %v211 = vpack.c.b16 %v209, %v208
        %v212 = vpack.c.b16 %v210, %v210
        %vm214 = vcmask 162816
        %v216 = vsel %vm214, %v195, 0
        %vm218 = vcmask 1041408
        %v220 = vsel %vm218, %v212, 0
        %222 = vmatprep.subr.bf16.mxu0 0
        %223 = vmatpush1.bf16.msra.mxu0 0
        %224 = vmatprep.subr.bf16.mxu0 0
        %225 = vmatpush1.bf16.msra.mxu0 0
        %226 = vmatprep.subr.bf16.mxu0 0
        %227 = vmatpush1.bf16.msra.mxu0 0
        %228 = vmatprep.subr.bf16.mxu0 0
        %229 = vmatpush1.bf16.msra.mxu0 0
        %230 = vmatprep.subr.bf16.mxu0 0
        %231 = vmatpush1.bf16.msra.mxu0 0
        %232 = vmatprep.subr.bf16.mxu0 0
        %233 = vmatpush1.bf16.msra.mxu0 0
        %234 = vmatprep.subr.bf16.mxu0 0
        %235 = vmatpush1.bf16.msra.mxu0 %v220
        %236 = vmatprep.subr.bf16.mxu0 0
        %237 = vmatpush1.bf16.msra.mxu0 %v211
        %238 = vmatprep.subr.bf16.mxu0 0
        %239 = vmatpush2.bf16.msra.mxu0 0
        %240 = vmatprep.subr.bf16.mxu0 0
        %241 = vmatpush2.bf16.msra.mxu0 0
        %242 = vmatprep.subr.bf16.mxu0 0
        %243 = vmatpush2.bf16.msra.mxu0 0
        %244 = vmatprep.subr.bf16.mxu0 0
        %245 = vmatpush2.bf16.msra.mxu0 0
        %246 = vmatprep.subr.bf16.mxu0 0
        %247 = vmatpush2.bf16.msra.mxu0 0
        %248 = vmatprep.subr.bf16.mxu0 0
        %249 = vmatpush2.bf16.msra.mxu0 0
        %250 = vmatprep.subr.bf16.mxu0 0
        %251 = vmatpush2.bf16.msra.mxu0 0
        %252 = vmatprep.subr.bf16.mxu0 0
        %253 = vmatpush2.bf16.msra.mxu0 0
        %254 = vmatprep.mubr.bf16.mxu0 0
        %255 = vmatmul.mubr.bf16.gmra.mxu0 %v216
        %v256 = vpop.f32.mrf.mxu0
        %v257 = vadd.f32 %v203, %v256
        %v258 = vpop.f32.mrf.mxu0
        %v259 = vpop.f32.mrf.mxu0
        %v260 = vpop.f32.mrf.mxu0
        %261 = vdwg.mxu0
        %v262 = vmul.f32 %v257, 0.2
        %v263 = vmax.f32 %v257, %v262
        %264 = vst [vmem:[%s185] sm:$0xff] %v263
        %s265 = sand.u32 %s109, 1
        %s266 = scalar_lea.sflag [#allocation3], %s265
        %s267 = sand.u32 %s109, 1
        %s268 = smul.addr %s267, 8
        %s269 = scalar_lea.vmem [#allocation2], %s268
        // Predicated region
        $region33: #{bottleneck_forward.1} parent=31 // pred_check
          %p270 = pneg %p119
        $region34: #{bottleneck_forward.1} parent=31 // pred_check_branch
          %272 = sbr.rel (%p270) target = $region36
        $region35: #{bottleneck_forward.1} parent=31 // pred_region
          %s274 = ssub.s32 128, 128
          %275 = vsyncadd %s266, %s274
          %s276 = sadd.s32 %s22, %s21
          %s277 = smul.addr %s276, 128
          %s278 = scalar_lea.hbm %s3, %s277
          %s280 = sshll.u32 %s269, 4
          %s281 = int_to_ptr.vmem [resolvable:$true] %s280
          %283 = dma.vmem_to_hbm [thread:$0]  %s281, 128, %s278, %s266
        $region36: #{bottleneck_forward.1} parent=31 // pred_fallthru
          _
      $region32: #{bottleneck_forward.1} parent=5 // pred_fallthru
        _
      %p284 = scmp.le.s32.totalorder 2, %s12
      // Predicated region
      $region37: #{bottleneck_forward.1} parent=5 // pred_check
        %p285 = pneg %p284
      $region38: #{bottleneck_forward.1} parent=5 // pred_check_branch
        %287 = sbr.rel (%p285) target = $region40
      $region39: #{bottleneck_forward.1} parent=5 // pred_region
        %s288 = ssub.s32 %s12, 2
        // Predicated region
        $region41: #{bottleneck_forward.1} parent=39 // pred_check
          %p289 = pneg %p125
        $region42: #{bottleneck_forward.1} parent=39 // pred_check_branch
          %291 = sbr.rel (%p289) target = $region44
        $region43: #{bottleneck_forward.1} parent=39 // pred_region
          %s292 = sand.u32 %s110, 1
          %s293 = scalar_lea.sflag [#allocation3], %s292
          %s294 = sand.u32 %s110, 1
          %s295 = smul.addr %s294, 8
          %s296 = scalar_lea.vmem [#allocation2], %s295
          %297 = dma.done %s293, 128
        $region44: #{bottleneck_forward.1} parent=39 // pred_fallthru
          _
      $region40: #{bottleneck_forward.1} parent=5 // pred_fallthru
        _
    $region6: #{bottleneck_forward.1} parent=1 // loop_footer
      %s16 = sadd.s32 1, %s12
    $region7: #{bottleneck_forward.1} parent=1 // loop_footer_branch
      %11 = sbr.rel target = $region3
    $region8: #{bottleneck_forward.1} parent=1 // loop_exit
      _
    %298 = vsyncpa [#allocation3], 1
    %s299 = scalar_lea.sflag [#allocation3], 1
    %300 = vsyncpa %s299, 1

</llo_original>
